<compile_context>
chip_gen: v7x
topology: tpu7x:2x2x1
jax: 0.10.0
libtpu: 0.0.40
codegen_flags: <defaults>
</compile_context>

<pallas_src>
import jax
import jax.numpy as jnp
from jax import lax
from jax.experimental import pallas as pl
from jax.experimental.pallas import tpu as pltpu


STATE_DIM = 2      # [position, velocity]
HIDDEN = 32
FORCE_DIM = 1

_HIDDEN_CHUNK = 8  # one f32 sublane-vreg worth of hidden rows
_LANE = 128


def dynamics_kernel(x_ref, w1_ref, b1_ref, w2_ref, b2_ref, o_ref):
    """Lane-dense (batch-on-lanes) dynamics step.

    x_ref : (STATE_DIM, TB)       f32  state, batch on the lane axis
    w1_ref: (HIDDEN, STATE_DIM)   f32  first layer, pre-transposed (VMEM resident)
    b1_ref: (HIDDEN, 1)           f32  (VMEM resident)
    w2_ref: (HIDDEN, FORCE_DIM)   f32  (VMEM resident)
    b2_ref: (1, 1)                f32  (SMEM scalar)
    o_ref : (1 + FORCE_DIM, TB)   f32  [velocity ; force]
    """
    x0 = x_ref[0:1, :]                                   # (1, TB) position
    x1 = x_ref[1:2, :]                                   # (1, TB) velocity

    # Accumulate the force over hidden-row chunks so the live intermediate is
    # only (HC, TB) instead of (HIDDEN, TB); fori_loop bounds the live range.
    def body(c, acc):
        r0 = pl.multiple_of(c * _HIDDEN_CHUNK, _HIDDEN_CHUNK)
        w1c = w1_ref[pl.ds(r0, _HIDDEN_CHUNK), :]        # (HC, 2)
        b1c = b1_ref[pl.ds(r0, _HIDDEN_CHUNK), :]        # (HC, 1)
        w2c = w2_ref[pl.ds(r0, _HIDDEN_CHUNK), :]        # (HC, 1)
        # K = 2 layer as two VPU broadcast FMAs (no MXU needed).
        h = jnp.tanh(w1c[:, 0:1] * x0 + w1c[:, 1:2] * x1 + b1c)   # (HC, TB)
        # HIDDEN-chunk -> 1 projection: VPU multiply + XLU sublane reduce.
        return acc + jnp.sum(h * w2c, axis=0, keepdims=True)      # (1, TB)

    acc0 = jnp.zeros(x1.shape, jnp.float32)
    force = lax.fori_loop(0, HIDDEN // _HIDDEN_CHUNK, body, acc0)
    force = force + b2_ref[0, 0]                         # scalar bias from SMEM

    # Direct full-lane row writes; no concatenate / lane shuffles.
    o_ref[0:1, :] = x1
    o_ref[1:2, :] = force.astype(o_ref.dtype)


def dynamics_forward_state_major(x_t, w1, b1, w2, b2, *, block_b=32768):
    """Dynamics in state-major layout: x_t (STATE_DIM, B) -> (1+FORCE_DIM, B).

    Preferred entry point for integrator loops (no HBM transpose passes).
    """
    D, B = x_t.shape
    assert D == STATE_DIM, (D, B)
    H = w1.shape[1]
    F = w2.shape[1]
    assert F == FORCE_DIM == 1

    # Tiny, one-time weight reshapes (negligible traffic).
    w1_t = w1.T                                          # (H, STATE_DIM)
    b1_c = b1.reshape(H, 1)
    w2_c = w2.reshape(H, F)
    b2_c = b2.reshape(1, 1)

    # Batch tiling on the lane axis:
    #   * B <= 256: single full-extent block.
    #   * otherwise: aim for >= 2 grid steps (v7x megacore), capped at block_b
    #     lanes per step (>= 256 KB I/O per grid step at the cap).
    if B <= 2 * _LANE:
        tile_b = B
    else:
        tile_b = min(block_b, pl.cdiv(pl.cdiv(B, 2), _LANE) * _LANE)
    grid = (pl.cdiv(B, tile_b),)                         # ragged last block OK

    flops = 2 * B * (STATE_DIM * H + H * F)
    bytes_accessed = 4 * (B * (STATE_DIM + 1 + F) + H * (STATE_DIM + F + 1) + F)

    out_t = pl.pallas_call(
        dynamics_kernel,
        out_shape=jax.ShapeDtypeStruct((1 + F, B), x_t.dtype),
        grid=grid,
        in_specs=[
            pl.BlockSpec((STATE_DIM, tile_b), lambda i: (0, i)),   # x tile
            pl.BlockSpec((H, STATE_DIM), lambda i: (0, 0)),        # W1 (resident)
            pl.BlockSpec((H, 1), lambda i: (0, 0)),                # b1 (resident)
            pl.BlockSpec((H, F), lambda i: (0, 0)),                # W2 (resident)
            pl.BlockSpec((1, 1), lambda i: (0, 0),                 # b2 scalar
                         memory_space=pltpu.MemorySpace.SMEM),
        ],
        out_specs=pl.BlockSpec((1 + F, tile_b), lambda i: (0, i)),
        compiler_params=pltpu.CompilerParams(
            dimension_semantics=("parallel",),
            vmem_limit_bytes=32 * 1024 * 1024),
        cost_estimate=pl.CostEstimate(
            flops=flops, transcendentals=B * H, bytes_accessed=bytes_accessed),
    )(x_t, w1_t, b1_c, w2_c, b2_c)

    return out_t                                         # (1 + F, B)


def dynamics_forward(x, w1, b1, w2, b2, *, block_b=32768):
    """PyTorch-API layout: x (B, STATE_DIM) -> (B, 1+FORCE_DIM).

    Thin compatibility wrapper: transposes once at each boundary. For repeated
    calls (ODE integration), keep the state in (STATE_DIM, B) layout and call
    dynamics_forward_state_major directly to avoid the extra HBM passes.
    """
    out_t = dynamics_forward_state_major(x.T, w1, b1, w2, b2, block_b=block_b)
    return out_t.T


def _init_control_params(key):
    """Deterministic PyTorch-Linear-style init (uniform +-1/sqrt(fan_in))."""
    k1, k2, k3, k4 = jax.random.split(key, 4)
    lim1 = 1.0 / jnp.sqrt(jnp.float32(STATE_DIM))
    lim2 = 1.0 / jnp.sqrt(jnp.float32(HIDDEN))
    w1 = jax.random.uniform(k1, (STATE_DIM, HIDDEN), jnp.float32, -lim1, lim1)
    b1 = jax.random.uniform(k2, (HIDDEN,), jnp.float32, -lim1, lim1)
    w2 = jax.random.uniform(k3, (HIDDEN, FORCE_DIM), jnp.float32, -lim2, lim2)
    b2 = jax.random.uniform(k4, (FORCE_DIM,), jnp.float32, -lim2, lim2)
    return w1, b1, w2, b2


def _reference(x, w1, b1, w2, b2):
    hi = lax.Precision.HIGHEST
    force = jnp.tanh(jnp.dot(x, w1, precision=hi) + b1)
    force = jnp.dot(force, w2, precision=hi) + b2
    return jnp.concatenate([x[:, 1:2], force], axis=1)


if __name__ == "__main__":
    key = jax.random.PRNGKey(0)
    k_p, *k_xs = jax.random.split(key, 5)

    w1, b1, w2, b2 = _init_control_params(k_p)

    # B=8   : single full-extent block (grid = 1).
    # B=1280: two exact 640-lane blocks (megacore path, grid = 2).
    # B=2000: two 1024-lane blocks with a ragged last block (no jnp.pad).
    for kx, B in zip(k_xs, (8, 1280, 2000)):
        x = jax.random.normal(kx, (B, STATE_DIM), dtype=jnp.float32)
        out = jax.block_until_ready(dynamics_forward(x, w1, b1, w2, b2))
        ref = _reference(x, w1, b1, w2, b2)
        assert out.shape == (B, 1 + FORCE_DIM), out.shape
        assert jnp.allclose(out, ref, atol=1e-4, rtol=1e-4), f"mismatch (B={B})"

    print("KERNEL_OK")
</pallas_src>

<mosaic_0001>
module attributes {stable_mosaic.version = 11 : i64} {
  func.func @dynamics_kernel(%arg0: i32, %arg1: memref<2x8xf32, #tpu.memory_space<vmem>>, %arg2: memref<32x2xf32, #tpu.memory_space<vmem>>, %arg3: memref<32x1xf32, #tpu.memory_space<vmem>>, %arg4: memref<32x1xf32, #tpu.memory_space<vmem>>, %arg5: memref<1x1xf32, #tpu.memory_space<smem>>, %arg6: memref<2x8xf32, #tpu.memory_space<vmem>>) attributes {dimension_semantics = [#tpu.dimension_semantics<parallel>], iteration_bounds = array<i64: 1>, scalar_prefetch = 0 : i64, scratch_operands = 0 : i64, tpu.core_type = #tpu.core_type<tc>, window_params = [{transform_indices = @transform_0, window_bounds = array<i64: 2, 8>}, {pipeline_mode = #tpu.pipeline_mode<synchronous>, transform_indices = @transform_1, window_bounds = array<i64: 32, 2>}, {pipeline_mode = #tpu.pipeline_mode<synchronous>, transform_indices = @transform_2, window_bounds = array<i64: 32, 1>}, {pipeline_mode = #tpu.pipeline_mode<synchronous>, transform_indices = @transform_3, window_bounds = array<i64: 32, 1>}, {transform_indices = @transform_4, window_bounds = array<i64: 1, 1>}, {transform_indices = @transform_5, window_bounds = array<i64: 2, 8>}]} {
    %c0 = arith.constant 0 : index
    %c0_0 = arith.constant 0 : index
    %0 = vector.load %arg1[%c0, %c0_0] : memref<2x8xf32, #tpu.memory_space<vmem>>, vector<1x8xf32>
    %c1 = arith.constant 1 : index
    %c0_1 = arith.constant 0 : index
    %1 = vector.load %arg1[%c1, %c0_1] : memref<2x8xf32, #tpu.memory_space<vmem>>, vector<1x8xf32>
    %cst = arith.constant 0.000000e+00 : f32
    %2 = vector.broadcast %cst : f32 to vector<1x8xf32>
    %c0_i32 = arith.constant 0 : i32
    %c4_i32 = arith.constant 4 : i32
    %3 = arith.addi %c0_i32, %c4_i32 : i32
    %c1_i32 = arith.constant 1 : i32
    %4 = scf.for %arg7 = %c0_i32 to %3 step %c1_i32 iter_args(%arg8 = %2) -> (vector<1x8xf32>)  : i32 {
      %c8_i32 = arith.constant 8 : i32
      %10 = arith.muli %arg7, %c8_i32 : i32
      %11 = tpu.assume_multiple %10, 8 : i32
      %12 = arith.index_cast %11 : i32 to index
      %c0_9 = arith.constant 0 : index
      %13 = vector.load %arg2[%12, %c0_9] : memref<32x2xf32, #tpu.memory_space<vmem>>, vector<8x2xf32>
      %14 = arith.index_cast %11 : i32 to index
      %c0_10 = arith.constant 0 : index
      %15 = vector.load %arg3[%14, %c0_10] : memref<32x1xf32, #tpu.memory_space<vmem>>, vector<8x1xf32>
      %16 = arith.index_cast %11 : i32 to index
      %c0_11 = arith.constant 0 : index
      %17 = vector.load %arg4[%16, %c0_11] : memref<32x1xf32, #tpu.memory_space<vmem>>, vector<8x1xf32>
      %18 = vector.extract_strided_slice %13 {offsets = [0, 0], sizes = [8, 1], strides = [1, 1]} : vector<8x2xf32> to vector<8x1xf32>
      %19 = vector.broadcast %18 : vector<8x1xf32> to vector<8x8xf32>
      %20 = vector.broadcast %0 : vector<1x8xf32> to vector<8x8xf32>
      %21 = arith.mulf %19, %20 : vector<8x8xf32>
      %22 = vector.extract_strided_slice %13 {offsets = [0, 1], sizes = [8, 1], strides = [1, 1]} : vector<8x2xf32> to vector<8x1xf32>
      %23 = vector.broadcast %22 : vector<8x1xf32> to vector<8x8xf32>
      %24 = vector.broadcast %1 : vector<1x8xf32> to vector<8x8xf32>
      %25 = arith.mulf %23, %24 : vector<8x8xf32>
      %26 = arith.addf %21, %25 : vector<8x8xf32>
      %27 = vector.broadcast %15 : vector<8x1xf32> to vector<8x8xf32>
      %28 = arith.addf %26, %27 : vector<8x8xf32>
      %29 = math.tanh %28 : vector<8x8xf32>
      %30 = vector.broadcast %17 : vector<8x1xf32> to vector<8x8xf32>
      %31 = arith.mulf %29, %30 : vector<8x8xf32>
      %cst_12 = arith.constant dense<0.000000e+00> : vector<8xf32>
      %32 = vector.multi_reduction <add>, %31, %cst_12 [0] : vector<8x8xf32> to vector<8xf32>
      %33 = vector.shape_cast %32 : vector<8xf32> to vector<1x8xf32>
      %34 = arith.addf %arg8, %33 : vector<1x8xf32>
      scf.yield %34 : vector<1x8xf32>
    }
    %c4_i32_2 = arith.constant 4 : i32
    %c0_3 = arith.constant 0 : index
    %c0_4 = arith.constant 0 : index
    %5 = memref.load %arg5[%c0_3, %c0_4] : memref<1x1xf32, #tpu.memory_space<smem>>
    %6 = vector.broadcast %5 : f32 to vector<1x8xf32>
    %7 = arith.addf %4, %6 : vector<1x8xf32>
    %c0_5 = arith.constant 0 : index
    %c0_6 = arith.constant 0 : index
    %8 = vector.load %arg6[%c0_5, %c0_6] : memref<2x8xf32, #tpu.memory_space<vmem>>, vector<1x8xf32>
    tpu.vector_store %arg6[%c0_5, %c0_6], %1 {strides = array<i32>} : memref<2x8xf32, #tpu.memory_space<vmem>>, vector<1x8xf32>,
    %c1_7 = arith.constant 1 : index
    %c0_8 = arith.constant 0 : index
    %9 = vector.load %arg6[%c1_7, %c0_8] : memref<2x8xf32, #tpu.memory_space<vmem>>, vector<1x8xf32>
    tpu.vector_store %arg6[%c1_7, %c0_8], %7 {strides = array<i32>} : memref<2x8xf32, #tpu.memory_space<vmem>>, vector<1x8xf32>,
    return
  }
  func.func @transform_0(%arg0: i32) -> (i32, i32) {
    %c0_i32 = arith.constant 0 : i32
    %c0_i32_0 = arith.constant 0 : i32
    return %c0_i32, %arg0 : i32, i32
  }
  func.func @transform_1(%arg0: i32) -> (i32, i32) {
    %c0_i32 = arith.constant 0 : i32
    %c0_i32_0 = arith.constant 0 : i32
    %c0_i32_1 = arith.constant 0 : i32
    return %c0_i32, %c0_i32_0 : i32, i32
  }
  func.func @transform_2(%arg0: i32) -> (i32, i32) {
    %c0_i32 = arith.constant 0 : i32
    %c0_i32_0 = arith.constant 0 : i32
    %c0_i32_1 = arith.constant 0 : i32
    return %c0_i32, %c0_i32_0 : i32, i32
  }
  func.func @transform_3(%arg0: i32) -> (i32, i32) {
    %c0_i32 = arith.constant 0 : i32
    %c0_i32_0 = arith.constant 0 : i32
    %c0_i32_1 = arith.constant 0 : i32
    return %c0_i32, %c0_i32_0 : i32, i32
  }
  func.func @transform_4(%arg0: i32) -> (i32, i32) {
    %c0_i32 = arith.constant 0 : i32
    %c0_i32_0 = arith.constant 0 : i32
    %c0_i32_1 = arith.constant 0 : i32
    return %c0_i32, %c0_i32_0 : i32, i32
  }
  func.func @transform_5(%arg0: i32) -> (i32, i32) {
    %c0_i32 = arith.constant 0 : i32
    %c0_i32_0 = arith.constant 0 : i32
    return %c0_i32, %arg0 : i32, i32
  }
}

</mosaic_0001>

<llo_original>
// kernel: tpu_custom_call.1
$region0: #{tpu_custom_call.1}
  #allocation0 [shape = 'u32[]', space=smem, size = 0x4, offset = 0x4, fixed_abs, tag = 'smem constant byte address 0x4 - core index']
  #allocation1 [shape = 'u32[144,128]{1,0:T(1,128)}', space=vmem, size = 0x12000, scoped, tag = 'internal scratch']
  #allocation2 [shape = 'f32[1,1]{1,0:T(1,128)S(6)}', space=smem, size = 0x200, scoped, tag = 'scoped memory for tpu_custom_call.1']
  %s0 = inlined_call_operand.vmem [shape: f32[2,8], index: 0, kind: input, shape index: {}]
  %s1 = inlined_call_operand.vmem [shape: f32[32,2], index: 1, kind: input, shape index: {}]
  %s2 = inlined_call_operand.vmem [shape: f32[32,1], index: 2, kind: input, shape index: {}]
  %s3 = inlined_call_operand.vmem [shape: f32[32,1], index: 3, kind: input, shape index: {}]
  %s4 = inlined_call_operand.<no memory space> [shape: f32[1,1], index: 4, kind: input, shape index: {}]
  %s5 = inlined_call_operand.hbm [shape: f32[2,8], index: 5, kind: output, shape index: {}]
  %s6 = sld [smem:[#allocation0]]
  $region37: #{tpu_custom_call.1} parent=0
    _
  %s8 = ssub.s32 1, %s6
  %s9 = scalar_select 0, %s8, %s6
  %10 = sst [smem:[#allocation2]] %s4
  $region1: #{tpu_custom_call.1} parent=0
    #allocation3 [shape = 'u8[1024]{0}', space=vmem, size = 0x400, scoped, tag = 'output window, operand 0, single buffered']
    #allocation4 [shape = 's32[1]{0}', space=sflag, size = 0x4, scoped, tag = 'scoped memory for tpu_custom_call.1']
    %11 = vsyncpa [#allocation4], 0
    // Predicated region
    $region2: #{tpu_custom_call.1} parent=1 // pred_check
      _
    $region3: #{tpu_custom_call.1} parent=1 // pred_check_branch
      %13 = sbr.rel (0) target = $region5
    $region4: #{tpu_custom_call.1} parent=1 // pred_region
      _
    $region5: #{tpu_custom_call.1} parent=1 // pred_fallthru
      _
    // Predicated region
    $region6: #{tpu_custom_call.1} parent=1 // pred_check
      _
    $region7: #{tpu_custom_call.1} parent=1 // pred_check_branch
      %15 = sbr.rel (0) target = $region9
    $region8: #{tpu_custom_call.1} parent=1 // pred_region
      _
    $region9: #{tpu_custom_call.1} parent=1 // pred_fallthru
      _
    // Predicated region
    $region10: #{tpu_custom_call.1} parent=1 // pred_check
      _
    $region11: #{tpu_custom_call.1} parent=1 // pred_check_branch
      %17 = sbr.rel (0) target = $region13
    $region12: #{tpu_custom_call.1} parent=1 // pred_region
      _
    $region13: #{tpu_custom_call.1} parent=1 // pred_fallthru
      _
    // Predicated region
    $region14: #{tpu_custom_call.1} parent=1 // pred_check
      _
    $region15: #{tpu_custom_call.1} parent=1 // pred_check_branch
      %19 = sbr.rel (0) target = $region17
    $region16: #{tpu_custom_call.1} parent=1 // pred_region
      _
    $region17: #{tpu_custom_call.1} parent=1 // pred_fallthru
      _
    // Predicated region
    $region18: #{tpu_custom_call.1} parent=1 // pred_check
      _
    $region19: #{tpu_custom_call.1} parent=1 // pred_check_branch
      %21 = sbr.rel (0) target = $region21
    $region20: #{tpu_custom_call.1} parent=1 // pred_region
      _
    $region21: #{tpu_custom_call.1} parent=1 // pred_fallthru
      _
    %v22 = vld [vmem:[%s0] sm:$0x1]
    %v23 = vld [vmem:[%s0 + $0x1] sm:$0x1]
    loop: start=0, step=1, limit=4
    $region22: #{tpu_custom_call.1} parent=1 // loop_pre_header
      _
    $region23: #{tpu_custom_call.1} parent=1 // loop_header
      %s25 = sphi 0, %s29
      %p26 = scmp.ge.s32.totalorder %s25, 4
      %v30 = vphi 0.0, %v79
    $region24: #{tpu_custom_call.1} parent=1 // loop_header_branch
      %28 = sbr.rel (%p26) target = $region28
    $region25: #{tpu_custom_call.1} parent=1 // loop_body
      %s31 = smul.u32 %s25, 8
      %s32 = scalar_lea.vmem %s1, %s31
      %v33 = vld [vmem:[%s32] sm:$0xff]
      %s34 = scalar_lea.vmem %s2, %s31
      %v35 = vld [vmem:[%s34] sm:$0xff]
      %s36 = scalar_lea.vmem %s3, %s31
      %v37 = vld [vmem:[%s36] sm:$0xff]
      %39 = vset.pattern.permute.xlu0 0
      %40 = vperm.xlu0 %39, %v33
      %v41 = vpop.permute.xlu0 %40
      %v43 = vlaneseq
      %v44 = vshrl.u32 %v43, 7
      %v45 = vsub.s32 0, %v44
      %v46 = vrot.slane %v22, %v45
      %v47 = vmul.f32 %v41, %v46
      %48 = vset.pattern.permute.xlu0 1
      %49 = vperm.xlu0 %48, %v33
      %v50 = vpop.permute.xlu0 %49
      %v52 = vlaneseq
      %v53 = vshrl.u32 %v52, 7
      %v54 = vsub.s32 0, %v53
      %v55 = vrot.slane %v23, %v54
      %v56 = vmul.f32 %v50, %v55
      %v57 = vadd.f32 %v47, %v56
      %59 = vset.pattern.permute.xlu0 0
      %60 = vperm.xlu0 %59, %v35
      %v61 = vpop.permute.xlu0 %60
      %v63 = vadd.f32 %v57, %v61
      %v64 = vtanh.pop %v63
      %66 = vset.pattern.permute.xlu0 0
      %67 = vperm.xlu0 %66, %v37
      %v68 = vpop.permute.xlu0 %67
      %v70 = vmul.f32 %v64, %v68
      %vm71 = vcmask 64512
      %v72 = vsel %vm71, %v70, 0.0
      %v73 = vrot.slane %v72, 4
      %v74 = vadd.f32 %v72, %v73
      %v75 = vrot.slane %v74, 2
      %v76 = vadd.f32 %v74, %v75
      %v77 = vrot.slane %v76, 1
      %v78 = vadd.f32 %v76, %v77
      %v79 = vadd.f32 %v30, %v78
    $region26: #{tpu_custom_call.1} parent=1 // loop_footer
      %s29 = sadd.s32 1, %s25
    $region27: #{tpu_custom_call.1} parent=1 // loop_footer_branch
      %24 = sbr.rel target = $region23
    $region28: #{tpu_custom_call.1} parent=1 // loop_exit
      _
    %s80 = sld [smem:[#allocation2]]
    %v81 = vstv %s80
    %v82 = vadd.f32 %v30, %v81
    %vm83 = vcmask 57344
    %84 = vst.msk [vmem:[#allocation3] sm:$0x1] %vm83, %v23
    %85 = vst.msk [vmem:[#allocation3 + $0x1] sm:$0x1] %vm83, %v82
    // Predicated region
    $region29: #{tpu_custom_call.1} parent=1 // pred_check
      _
    $region30: #{tpu_custom_call.1} parent=1 // pred_check_branch
      %87 = sbr.rel (0) target = $region32
    $region31: #{tpu_custom_call.1} parent=1 // pred_region
      %s89 = ssub.s32 32, 32
      %90 = vsyncadd [#allocation4], %s89
      %s92 = sshll.u32 [#allocation3], 4
      %s93 = int_to_ptr.vmem [resolvable:$true] %s92
      %95 = dma.vmem_to_hbm [thread:$0]  %s93, 32, %s5, [#allocation4]
    $region32: #{tpu_custom_call.1} parent=1 // pred_fallthru
      _
    // Predicated region
    $region33: #{tpu_custom_call.1} parent=1 // pred_check
      _
    $region34: #{tpu_custom_call.1} parent=1 // pred_check_branch
      %97 = sbr.rel (0) target = $region36
    $region35: #{tpu_custom_call.1} parent=1 // pred_region
      %98 = dma.done [#allocation4], 32
    $region36: #{tpu_custom_call.1} parent=1 // pred_fallthru
      _
    %99 = vsyncpa [#allocation4], 1

</llo_original>
